<compile_context>
chip_gen: v6e
topology: v6e:2x2x1
jax: 0.10.0
libtpu: 0.0.40
codegen_flags: <defaults>
</compile_context>

<pallas_src>
import functools

import jax
import jax.numpy as jnp
from jax import lax
from jax.experimental import pallas as pl
from jax.experimental.pallas import tpu as pltpu

EPS = 1e-6


def _rmsnorm(v, w):
    var = jnp.mean(v * v, axis=-1, keepdims=True)
    return v * lax.rsqrt(var + EPS) * w


def _segmented_linear_scan(f_gate, inp, seq_len):
    """Inclusive scan rec_t = f_t * rec_{t-1} + inp_t along rows.

    Rows are (batch * time) with contiguous segments of `seq_len` time steps;
    the scan never crosses a segment (batch) boundary.  Log-depth
    (Hillis-Steele) formulation with the associative combine
        (a1, b1) o (a2, b2) = (a1 * a2, b1 * a2 + b2).
    """
    rows, width = f_gate.shape
    t_local = lax.broadcasted_iota(jnp.int32, (rows, width), 0) % seq_len
    a, b = f_gate, inp
    d = 1
    while d < seq_len:                                   # log2(T) static steps
        a_prev = jnp.concatenate(
            [jnp.ones((d, width), a.dtype), a[:-d]], axis=0)
        b_prev = jnp.concatenate(
            [jnp.zeros((d, width), b.dtype), b[:-d]], axis=0)
        keep = t_local >= d                              # identity across segment edges
        a_prev = jnp.where(keep, a_prev, 1.0)
        b_prev = jnp.where(keep, b_prev, 0.0)
        new_a = a_prev * a
        new_b = b_prev * a + b
        a, b = new_a, new_b
        d *= 2
    return b


def hgrn_block_kernel(x_ref, w_an_ref, w_ifg_ref, w_gn_ref, wo_ref,
                      w_mn_ref, w_gu_ref, w_down_ref, out_ref, *, seq_len):
    x = x_ref[...].astype(jnp.float32)                   # (R, D), R = b_blk * T
    E = w_gn_ref.shape[-1]
    I = w_gu_ref.shape[-1] // 2

    # ---- attn_norm ----
    h = _rmsnorm(x, w_an_ref[...])

    # ---- fused i/f/g projection: one wide bf16 MXU matmul ----
    ifg = jnp.dot(h.astype(jnp.bfloat16), w_ifg_ref[...],
                  preferred_element_type=jnp.float32)    # (R, 3E)
    i = ifg[:, :E]
    f = ifg[:, E:2 * E]
    g = ifg[:, 2 * E:]

    # lower_bound = 0 / layer_idx == 0 path
    f_sig = jax.nn.sigmoid(f)
    i_gated = i * jax.nn.sigmoid(i) * (1.0 - f_sig)      # swiglu(i, 1 - sigmoid(f))

    # ---- HGRN recurrence: log-depth segmented scan over time ----
    rec = _segmented_linear_scan(f_sig, i_gated, seq_len)  # (R, E)

    # ---- FusedRMSNormSwishGate + output projection ----
    o = _rmsnorm(rec, w_gn_ref[...]) * (g * jax.nn.sigmoid(g))
    attn_out = jnp.dot(o.astype(jnp.bfloat16), wo_ref[...],
                       preferred_element_type=jnp.float32)  # (R, D)

    # ---- residual + mlp_norm ----
    x2 = x + attn_out
    h2 = _rmsnorm(x2, w_mn_ref[...])

    # ---- HGRNMLP: fused gate/up matmul + swiglu + down projection ----
    gu = jnp.dot(h2.astype(jnp.bfloat16), w_gu_ref[...],
                 preferred_element_type=jnp.float32)     # (R, 2I)
    gate = gu[:, :I]
    up = gu[:, I:]
    mlp_in = (gate * jax.nn.sigmoid(gate) * up).astype(jnp.bfloat16)
    mlp = jnp.dot(mlp_in, w_down_ref[...],
                  preferred_element_type=jnp.float32)    # (R, D)

    out_ref[...] = (x2 + mlp).astype(out_ref.dtype)


def _choose_batch_block(B, T, target_rows=512):
    """Largest divisor of B whose row tile (b * T) stays within target_rows."""
    b = B
    while b > 1 and b * T > target_rows:
        b -= 1
        while B % b:
            b -= 1
    if b != B and (b * T) % 8 != 0:   # keep sublane-aligned row tiles
        b = B
    return b


def hgrn_asr_block(x, params, b_blk=None):
    B, T, D = x.shape
    E = params["wi"].shape[1]
    I = params["w_gate"].shape[1]
    if b_blk is None:
        b_blk = _choose_batch_block(B, T)
    assert B % b_blk == 0
    rows = b_blk * T

    # Fused bf16 matmul weights; norm weights stay f32.
    w_ifg = jnp.concatenate(
        [params["wi"], params["wf"], params["wg"]], axis=1).astype(jnp.bfloat16)
    w_gu = jnp.concatenate(
        [params["w_gate"], params["w_up"]], axis=1).astype(jnp.bfloat16)
    wo = params["wo"].astype(jnp.bfloat16)
    w_down = params["w_down"].astype(jnp.bfloat16)
    w_an = params["w_attn_norm"].astype(jnp.float32).reshape(1, D)
    w_gn = params["w_g_norm"].astype(jnp.float32).reshape(1, E)
    w_mn = params["w_mlp_norm"].astype(jnp.float32).reshape(1, D)

    weights = [w_an, w_ifg, w_gn, wo, w_mn, w_gu, w_down]
    x2d = x.reshape(B * T, D)   # stack batch*time on the matmul M dimension

    def full_spec(w):
        return pl.BlockSpec(w.shape, lambda b: (0, 0))

    flops = 2 * B * T * (D * 3 * E + E * D + D * 2 * I + I * D)
    transcendentals = B * T * (4 * E + 2 * I)
    bytes_accessed = 2 * B * T * D * 4 + sum(
        int(w.size) * w.dtype.itemsize for w in weights)

    out2d = pl.pallas_call(
        functools.partial(hgrn_block_kernel, seq_len=T),
        out_shape=jax.ShapeDtypeStruct((B * T, D), x.dtype),
        grid=(B // b_blk,),
        in_specs=[pl.BlockSpec((rows, D), lambda b: (b, 0))] +
                 [full_spec(w) for w in weights],
        out_specs=pl.BlockSpec((rows, D), lambda b: (b, 0)),
        compiler_params=pltpu.CompilerParams(
            dimension_semantics=("parallel",),
            vmem_limit_bytes=48 * 1024 * 1024),
        cost_estimate=pl.CostEstimate(
            flops=flops, transcendentals=transcendentals,
            bytes_accessed=bytes_accessed),
    )(x2d, *weights)
    return out2d.reshape(B, T, D)


def reference(x, p):
    """Pure-JAX reference (same math, same bf16 matmul precision)."""
    f32, bf16 = jnp.float32, jnp.bfloat16

    def mm(a, w):
        return jnp.dot(a.astype(bf16), w.astype(bf16), preferred_element_type=f32)

    xf = x.astype(f32)
    h = _rmsnorm(xf, p["w_attn_norm"])
    i = mm(h, p["wi"]); f = mm(h, p["wf"]); g = mm(h, p["wg"])
    f_sig = jax.nn.sigmoid(f)
    i_gated = i * jax.nn.sigmoid(i) * (1.0 - f_sig)

    def step(carry, tf):
        ft, it = tf
        carry = ft * carry + it
        return carry, carry

    _, rec = lax.scan(step, jnp.zeros((x.shape[0], i.shape[-1]), f32),
                      (jnp.moveaxis(f_sig, 1, 0), jnp.moveaxis(i_gated, 1, 0)))
    rec = jnp.moveaxis(rec, 0, 1)
    o = _rmsnorm(rec, p["w_g_norm"]) * (g * jax.nn.sigmoid(g))
    x2 = xf + mm(o, p["wo"])
    h2 = _rmsnorm(x2, p["w_mlp_norm"])
    gate = mm(h2, p["w_gate"]); up = mm(h2, p["w_up"])
    mlp = mm(gate * jax.nn.sigmoid(gate) * up, p["w_down"])
    return (x2 + mlp).astype(x.dtype)


def make_params(key, D, E, I):
    ks = jax.random.split(key, 8)
    n = lambda k, s: 0.05 * jax.random.normal(k, s, jnp.float32)
    return {
        "w_attn_norm": jnp.ones((1, D), jnp.float32),
        "wi": n(ks[0], (D, E)),
        "wf": n(ks[1], (D, E)),
        "wg": n(ks[2], (D, E)),
        "w_g_norm": jnp.ones((1, E), jnp.float32),
        "wo": n(ks[3], (E, D)),
        "w_mlp_norm": jnp.ones((1, D), jnp.float32),
        "w_gate": n(ks[4], (D, I)),
        "w_up": n(ks[5], (D, I)),
        "w_down": n(ks[6], (I, D)),
    }


if __name__ == "__main__":
    B, T, D = 2, 8, 32           # batch, seq, hidden_size
    E = D * 1                    # expand_ratio = 1
    # intermediate_size = 256 * ceil(int(D * 4 * 2/3) / 256)   (HGRNMLP default)
    I = 256 * ((int(D * 4 * 2 / 3) + 255) // 256)

    key = jax.random.PRNGKey(0)
    kx, kp = jax.random.split(key)
    x = jax.random.normal(kx, (B, T, D), jnp.float32)
    params = make_params(kp, D, E, I)

    out = jax.block_until_ready(hgrn_asr_block(x, params))
    ref = jax.block_until_ready(reference(x, params))

    assert out.shape == (B, T, D)
    assert bool(jnp.all(jnp.isfinite(out)))
    assert bool(jnp.allclose(out, ref, atol=5e-3, rtol=5e-3)), "mismatch vs reference"
    print("KERNEL_OK")
</pallas_src>

<mosaic_0001>
module attributes {stable_mosaic.version = 11 : i64} {
  func.func @hgrn_block_kernel(%arg0: i32, %arg1: memref<16x32xf32, #tpu.memory_space<vmem>>, %arg2: memref<1x32xf32, #tpu.memory_space<vmem>>, %arg3: memref<32x96xbf16, #tpu.memory_space<vmem>>, %arg4: memref<1x32xf32, #tpu.memory_space<vmem>>, %arg5: memref<32x32xbf16, #tpu.memory_space<vmem>>, %arg6: memref<1x32xf32, #tpu.memory_space<vmem>>, %arg7: memref<32x512xbf16, #tpu.memory_space<vmem>>, %arg8: memref<256x32xbf16, #tpu.memory_space<vmem>>, %arg9: memref<16x32xf32, #tpu.memory_space<vmem>>) attributes {dimension_semantics = [#tpu.dimension_semantics<parallel>], iteration_bounds = array<i64: 1>, scalar_prefetch = 0 : i64, scratch_operands = 0 : i64, tpu.core_type = #tpu.core_type<tc>, window_params = [{transform_indices = @transform_0, window_bounds = array<i64: 16, 32>}, {pipeline_mode = #tpu.pipeline_mode<synchronous>, transform_indices = @transform_1, window_bounds = array<i64: 1, 32>}, {pipeline_mode = #tpu.pipeline_mode<synchronous>, transform_indices = @transform_2, window_bounds = array<i64: 32, 96>}, {pipeline_mode = #tpu.pipeline_mode<synchronous>, transform_indices = @transform_3, window_bounds = array<i64: 1, 32>}, {pipeline_mode = #tpu.pipeline_mode<synchronous>, transform_indices = @transform_4, window_bounds = array<i64: 32, 32>}, {pipeline_mode = #tpu.pipeline_mode<synchronous>, transform_indices = @transform_5, window_bounds = array<i64: 1, 32>}, {pipeline_mode = #tpu.pipeline_mode<synchronous>, transform_indices = @transform_6, window_bounds = array<i64: 32, 512>}, {pipeline_mode = #tpu.pipeline_mode<synchronous>, transform_indices = @transform_7, window_bounds = array<i64: 256, 32>}, {transform_indices = @transform_8, window_bounds = array<i64: 16, 32>}]} {
    %c0 = arith.constant 0 : index
    %c0_0 = arith.constant 0 : index
    %0 = vector.load %arg1[%c0, %c0_0] : memref<16x32xf32, #tpu.memory_space<vmem>>, vector<16x32xf32>
    %c0_1 = arith.constant 0 : index
    %c0_2 = arith.constant 0 : index
    %1 = vector.load %arg2[%c0_1, %c0_2] : memref<1x32xf32, #tpu.memory_space<vmem>>, vector<1x32xf32>
    %2 = arith.mulf %0, %0 : vector<16x32xf32>
    %cst = arith.constant dense<0.000000e+00> : vector<16xf32>
    %3 = vector.multi_reduction <add>, %2, %cst [1] : vector<16x32xf32> to vector<16xf32>
    %4 = vector.shape_cast %3 : vector<16xf32> to vector<16x1xf32>
    %cst_3 = arith.constant 3.200000e+01 : f32
    %5 = vector.broadcast %cst_3 : f32 to vector<16x1xf32>
    %6 = arith.divf %4, %5 : vector<16x1xf32>
    %cst_4 = arith.constant 9.99999997E-7 : f32
    %7 = vector.broadcast %cst_4 : f32 to vector<16x1xf32>
    %8 = arith.addf %6, %7 : vector<16x1xf32>
    %9 = math.rsqrt %8 : vector<16x1xf32>
    %10 = vector.broadcast %9 : vector<16x1xf32> to vector<16x32xf32>
    %11 = arith.mulf %0, %10 : vector<16x32xf32>
    %12 = vector.broadcast %1 : vector<1x32xf32> to vector<16x32xf32>
    %13 = arith.mulf %11, %12 : vector<16x32xf32>
    %14 = arith.truncf %13 : vector<16x32xf32> to vector<16x32xbf16>
    %c0_5 = arith.constant 0 : index
    %c0_6 = arith.constant 0 : index
    %15 = vector.load %arg3[%c0_5, %c0_6] : memref<32x96xbf16, #tpu.memory_space<vmem>>, vector<32x96xbf16>
    %cst_7 = arith.constant dense<0.000000e+00> : vector<16x96xf32>
    %16 = tpu.matmul %14, %15, %cst_7 {dimension_numbers = #tpu.dot_dimension_numbers<[1], [0], [0], [1], [0, 0, 1, 1], [], []>} : vector<16x32xbf16>, vector<32x96xbf16>, vector<16x96xf32> -> vector<16x96xf32>
    %17 = vector.extract_strided_slice %16 {offsets = [0, 0], sizes = [16, 32], strides = [1, 1]} : vector<16x96xf32> to vector<16x32xf32>
    %18 = vector.extract_strided_slice %16 {offsets = [0, 32], sizes = [16, 32], strides = [1, 1]} : vector<16x96xf32> to vector<16x32xf32>
    %19 = vector.extract_strided_slice %16 {offsets = [0, 64], sizes = [16, 32], strides = [1, 1]} : vector<16x96xf32> to vector<16x32xf32>
    %20 = arith.negf %18 : vector<16x32xf32>
    %21 = math.exp %20 : vector<16x32xf32>
    %cst_8 = arith.constant 1.000000e+00 : f32
    %22 = vector.broadcast %cst_8 : f32 to vector<16x32xf32>
    %23 = arith.addf %22, %21 : vector<16x32xf32>
    %24 = arith.divf %22, %23 : vector<16x32xf32>
    %25 = arith.negf %17 : vector<16x32xf32>
    %26 = math.exp %25 : vector<16x32xf32>
    %cst_9 = arith.constant 1.000000e+00 : f32
    %27 = vector.broadcast %cst_9 : f32 to vector<16x32xf32>
    %28 = arith.addf %27, %26 : vector<16x32xf32>
    %29 = arith.divf %27, %28 : vector<16x32xf32>
    %30 = arith.mulf %17, %29 : vector<16x32xf32>
    %cst_10 = arith.constant 1.000000e+00 : f32
    %31 = vector.broadcast %cst_10 : f32 to vector<16x32xf32>
    %32 = arith.subf %31, %24 : vector<16x32xf32>
    %33 = arith.mulf %30, %32 : vector<16x32xf32>
    %34 = tpu.iota {dimensions = array<i32: 0>} : vector<16x32xi32>
    %c8_i32 = arith.constant 8 : i32
    %c0_i32 = arith.constant 0 : i32
    %35 = arith.cmpi eq, %c8_i32, %c0_i32 : i32
    %c1_i32 = arith.constant 1 : i32
    %36 = arith.select %35, %c1_i32, %c8_i32 : i32
    %37 = vector.broadcast %36 : i32 to vector<16x32xi32>
    %38 = arith.remsi %34, %37 : vector<16x32xi32>
    %c0_i32_11 = arith.constant 0 : i32
    %39 = vector.broadcast %c0_i32_11 : i32 to vector<16x32xi32>
    %40 = arith.cmpi ne, %38, %39 : vector<16x32xi32>
    %c0_i32_12 = arith.constant 0 : i32
    %41 = vector.broadcast %c0_i32_12 : i32 to vector<16x32xi32>
    %42 = arith.cmpi slt, %38, %41 : vector<16x32xi32>
    %c0_i32_13 = arith.constant 0 : i32
    %43 = arith.cmpi slt, %36, %c0_i32_13 : i32
    %44 = vector.broadcast %43 : i1 to vector<16x32xi1>
    %45 = vector.broadcast %44 : vector<16x32xi1> to vector<16x32xi1>
    %46 = arith.xori %42, %45 : vector<16x32xi1>
    %47 = arith.andi %46, %40 : vector<16x32xi1>
    %48 = vector.broadcast %36 : i32 to vector<16x32xi32>
    %49 = arith.addi %38, %48 : vector<16x32xi32>
    %50 = arith.select %47, %49, %38 : vector<16x32xi1>, vector<16x32xi32>
    %cst_14 = arith.constant 1.000000e+00 : f32
    %51 = vector.broadcast %cst_14 : f32 to vector<1x32xf32>
    %52 = vector.extract_strided_slice %24 {offsets = [0, 0], sizes = [15, 32], strides = [1, 1]} : vector<16x32xf32> to vector<15x32xf32>
    %53 = tpu.concatenate %51, %52 in 0 : vector<1x32xf32>, vector<15x32xf32> -> vector<16x32xf32>
    %cst_15 = arith.constant 0.000000e+00 : f32
    %54 = vector.broadcast %cst_15 : f32 to vector<1x32xf32>
    %55 = vector.extract_strided_slice %33 {offsets = [0, 0], sizes = [15, 32], strides = [1, 1]} : vector<16x32xf32> to vector<15x32xf32>
    %56 = tpu.concatenate %54, %55 in 0 : vector<1x32xf32>, vector<15x32xf32> -> vector<16x32xf32>
    %c1_i32_16 = arith.constant 1 : i32
    %57 = vector.broadcast %c1_i32_16 : i32 to vector<16x32xi32>
    %58 = arith.cmpi sge, %50, %57 : vector<16x32xi32>
    %cst_17 = arith.constant 1.000000e+00 : f32
    %59 = vector.broadcast %cst_17 : f32 to vector<16x32xf32>
    %60 = arith.select %58, %53, %59 : vector<16x32xi1>, vector<16x32xf32>
    %cst_18 = arith.constant 0.000000e+00 : f32
    %61 = vector.broadcast %cst_18 : f32 to vector<16x32xf32>
    %62 = arith.select %58, %56, %61 : vector<16x32xi1>, vector<16x32xf32>
    %63 = arith.mulf %60, %24 : vector<16x32xf32>
    %64 = arith.mulf %62, %24 : vector<16x32xf32>
    %65 = arith.addf %64, %33 : vector<16x32xf32>
    %cst_19 = arith.constant 1.000000e+00 : f32
    %66 = vector.broadcast %cst_19 : f32 to vector<2x32xf32>
    %67 = vector.extract_strided_slice %63 {offsets = [0, 0], sizes = [14, 32], strides = [1, 1]} : vector<16x32xf32> to vector<14x32xf32>
    %68 = tpu.concatenate %66, %67 in 0 : vector<2x32xf32>, vector<14x32xf32> -> vector<16x32xf32>
    %cst_20 = arith.constant 0.000000e+00 : f32
    %69 = vector.broadcast %cst_20 : f32 to vector<2x32xf32>
    %70 = vector.extract_strided_slice %65 {offsets = [0, 0], sizes = [14, 32], strides = [1, 1]} : vector<16x32xf32> to vector<14x32xf32>
    %71 = tpu.concatenate %69, %70 in 0 : vector<2x32xf32>, vector<14x32xf32> -> vector<16x32xf32>
    %c2_i32 = arith.constant 2 : i32
    %72 = vector.broadcast %c2_i32 : i32 to vector<16x32xi32>
    %73 = arith.cmpi sge, %50, %72 : vector<16x32xi32>
    %cst_21 = arith.constant 1.000000e+00 : f32
    %74 = vector.broadcast %cst_21 : f32 to vector<16x32xf32>
    %75 = arith.select %73, %68, %74 : vector<16x32xi1>, vector<16x32xf32>
    %cst_22 = arith.constant 0.000000e+00 : f32
    %76 = vector.broadcast %cst_22 : f32 to vector<16x32xf32>
    %77 = arith.select %73, %71, %76 : vector<16x32xi1>, vector<16x32xf32>
    %78 = arith.mulf %75, %63 : vector<16x32xf32>
    %79 = arith.mulf %77, %63 : vector<16x32xf32>
    %80 = arith.addf %79, %65 : vector<16x32xf32>
    %cst_23 = arith.constant 0.000000e+00 : f32
    %81 = vector.broadcast %cst_23 : f32 to vector<4x32xf32>
    %82 = vector.extract_strided_slice %80 {offsets = [0, 0], sizes = [12, 32], strides = [1, 1]} : vector<16x32xf32> to vector<12x32xf32>
    %83 = tpu.concatenate %81, %82 in 0 : vector<4x32xf32>, vector<12x32xf32> -> vector<16x32xf32>
    %c4_i32 = arith.constant 4 : i32
    %84 = vector.broadcast %c4_i32 : i32 to vector<16x32xi32>
    %85 = arith.cmpi sge, %50, %84 : vector<16x32xi32>
    %cst_24 = arith.constant 0.000000e+00 : f32
    %86 = vector.broadcast %cst_24 : f32 to vector<16x32xf32>
    %87 = arith.select %85, %83, %86 : vector<16x32xi1>, vector<16x32xf32>
    %88 = arith.mulf %87, %78 : vector<16x32xf32>
    %89 = arith.addf %88, %80 : vector<16x32xf32>
    %c0_25 = arith.constant 0 : index
    %c0_26 = arith.constant 0 : index
    %90 = vector.load %arg4[%c0_25, %c0_26] : memref<1x32xf32, #tpu.memory_space<vmem>>, vector<1x32xf32>
    %91 = arith.mulf %89, %89 : vector<16x32xf32>
    %cst_27 = arith.constant dense<0.000000e+00> : vector<16xf32>
    %92 = vector.multi_reduction <add>, %91, %cst_27 [1] : vector<16x32xf32> to vector<16xf32>
    %93 = vector.shape_cast %92 : vector<16xf32> to vector<16x1xf32>
    %cst_28 = arith.constant 3.200000e+01 : f32
    %94 = vector.broadcast %cst_28 : f32 to vector<16x1xf32>
    %95 = arith.divf %93, %94 : vector<16x1xf32>
    %cst_29 = arith.constant 9.99999997E-7 : f32
    %96 = vector.broadcast %cst_29 : f32 to vector<16x1xf32>
    %97 = arith.addf %95, %96 : vector<16x1xf32>
    %98 = math.rsqrt %97 : vector<16x1xf32>
    %99 = vector.broadcast %98 : vector<16x1xf32> to vector<16x32xf32>
    %100 = arith.mulf %89, %99 : vector<16x32xf32>
    %101 = vector.broadcast %90 : vector<1x32xf32> to vector<16x32xf32>
    %102 = arith.mulf %100, %101 : vector<16x32xf32>
    %103 = arith.negf %19 : vector<16x32xf32>
    %104 = math.exp %103 : vector<16x32xf32>
    %cst_30 = arith.constant 1.000000e+00 : f32
    %105 = vector.broadcast %cst_30 : f32 to vector<16x32xf32>
    %106 = arith.addf %105, %104 : vector<16x32xf32>
    %107 = arith.divf %105, %106 : vector<16x32xf32>
    %108 = arith.mulf %19, %107 : vector<16x32xf32>
    %109 = arith.mulf %102, %108 : vector<16x32xf32>
    %110 = arith.truncf %109 : vector<16x32xf32> to vector<16x32xbf16>
    %c0_31 = arith.constant 0 : index
    %c0_32 = arith.constant 0 : index
    %111 = vector.load %arg5[%c0_31, %c0_32] : memref<32x32xbf16, #tpu.memory_space<vmem>>, vector<32x32xbf16>
    %cst_33 = arith.constant dense<0.000000e+00> : vector<16x32xf32>
    %112 = tpu.matmul %110, %111, %cst_33 {dimension_numbers = #tpu.dot_dimension_numbers<[1], [0], [0], [1], [0, 0, 1, 1], [], []>} : vector<16x32xbf16>, vector<32x32xbf16>, vector<16x32xf32> -> vector<16x32xf32>
    %113 = arith.addf %0, %112 : vector<16x32xf32>
    %c0_34 = arith.constant 0 : index
    %c0_35 = arith.constant 0 : index
    %114 = vector.load %arg6[%c0_34, %c0_35] : memref<1x32xf32, #tpu.memory_space<vmem>>, vector<1x32xf32>
    %115 = arith.mulf %113, %113 : vector<16x32xf32>
    %cst_36 = arith.constant dense<0.000000e+00> : vector<16xf32>
    %116 = vector.multi_reduction <add>, %115, %cst_36 [1] : vector<16x32xf32> to vector<16xf32>
    %117 = vector.shape_cast %116 : vector<16xf32> to vector<16x1xf32>
    %cst_37 = arith.constant 3.200000e+01 : f32
    %118 = vector.broadcast %cst_37 : f32 to vector<16x1xf32>
    %119 = arith.divf %117, %118 : vector<16x1xf32>
    %cst_38 = arith.constant 9.99999997E-7 : f32
    %120 = vector.broadcast %cst_38 : f32 to vector<16x1xf32>
    %121 = arith.addf %119, %120 : vector<16x1xf32>
    %122 = math.rsqrt %121 : vector<16x1xf32>
    %123 = vector.broadcast %122 : vector<16x1xf32> to vector<16x32xf32>
    %124 = arith.mulf %113, %123 : vector<16x32xf32>
    %125 = vector.broadcast %114 : vector<1x32xf32> to vector<16x32xf32>
    %126 = arith.mulf %124, %125 : vector<16x32xf32>
    %127 = arith.truncf %126 : vector<16x32xf32> to vector<16x32xbf16>
    %c0_39 = arith.constant 0 : index
    %c0_40 = arith.constant 0 : index
    %128 = vector.load %arg7[%c0_39, %c0_40] : memref<32x512xbf16, #tpu.memory_space<vmem>>, vector<32x512xbf16>
    %cst_41 = arith.constant dense<0.000000e+00> : vector<16x512xf32>
    %129 = tpu.matmul %127, %128, %cst_41 {dimension_numbers = #tpu.dot_dimension_numbers<[1], [0], [0], [1], [0, 0, 1, 1], [], []>} : vector<16x32xbf16>, vector<32x512xbf16>, vector<16x512xf32> -> vector<16x512xf32>
    %130 = vector.extract_strided_slice %129 {offsets = [0, 0], sizes = [16, 256], strides = [1, 1]} : vector<16x512xf32> to vector<16x256xf32>
    %131 = vector.extract_strided_slice %129 {offsets = [0, 256], sizes = [16, 256], strides = [1, 1]} : vector<16x512xf32> to vector<16x256xf32>
    %132 = arith.negf %130 : vector<16x256xf32>
    %133 = math.exp %132 : vector<16x256xf32>
    %cst_42 = arith.constant 1.000000e+00 : f32
    %134 = vector.broadcast %cst_42 : f32 to vector<16x256xf32>
    %135 = arith.addf %134, %133 : vector<16x256xf32>
    %136 = arith.divf %134, %135 : vector<16x256xf32>
    %137 = arith.mulf %130, %136 : vector<16x256xf32>
    %138 = arith.mulf %137, %131 : vector<16x256xf32>
    %139 = arith.truncf %138 : vector<16x256xf32> to vector<16x256xbf16>
    %c0_43 = arith.constant 0 : index
    %c0_44 = arith.constant 0 : index
    %140 = vector.load %arg8[%c0_43, %c0_44] : memref<256x32xbf16, #tpu.memory_space<vmem>>, vector<256x32xbf16>
    %cst_45 = arith.constant dense<0.000000e+00> : vector<16x32xf32>
    %141 = tpu.matmul %139, %140, %cst_45 {dimension_numbers = #tpu.dot_dimension_numbers<[1], [0], [0], [1], [0, 0, 1, 1], [], []>} : vector<16x256xbf16>, vector<256x32xbf16>, vector<16x32xf32> -> vector<16x32xf32>
    %142 = arith.addf %113, %141 : vector<16x32xf32>
    %c0_46 = arith.constant 0 : index
    %c0_47 = arith.constant 0 : index
    %143 = vector.load %arg9[%c0_46, %c0_47] : memref<16x32xf32, #tpu.memory_space<vmem>>, vector<16x32xf32>
    tpu.vector_store %arg9[%c0_46, %c0_47], %142 {strides = array<i32>} : memref<16x32xf32, #tpu.memory_space<vmem>>, vector<16x32xf32>,
    return
  }
  func.func @transform_0(%arg0: i32) -> (i32, i32) {
    %c0_i32 = arith.constant 0 : i32
    %c0_i32_0 = arith.constant 0 : i32
    return %arg0, %c0_i32 : i32, i32
  }
  func.func @transform_1(%arg0: i32) -> (i32, i32) {
    %c0_i32 = arith.constant 0 : i32
    %c0_i32_0 = arith.constant 0 : i32
    %c0_i32_1 = arith.constant 0 : i32
    return %c0_i32, %c0_i32_0 : i32, i32
  }
  func.func @transform_2(%arg0: i32) -> (i32, i32) {
    %c0_i32 = arith.constant 0 : i32
    %c0_i32_0 = arith.constant 0 : i32
    %c0_i32_1 = arith.constant 0 : i32
    return %c0_i32, %c0_i32_0 : i32, i32
  }
  func.func @transform_3(%arg0: i32) -> (i32, i32) {
    %c0_i32 = arith.constant 0 : i32
    %c0_i32_0 = arith.constant 0 : i32
    %c0_i32_1 = arith.constant 0 : i32
    return %c0_i32, %c0_i32_0 : i32, i32
  }
  func.func @transform_4(%arg0: i32) -> (i32, i32) {
    %c0_i32 = arith.constant 0 : i32
    %c0_i32_0 = arith.constant 0 : i32
    %c0_i32_1 = arith.constant 0 : i32
    return %c0_i32, %c0_i32_0 : i32, i32
  }
  func.func @transform_5(%arg0: i32) -> (i32, i32) {
    %c0_i32 = arith.constant 0 : i32
    %c0_i32_0 = arith.constant 0 : i32
    %c0_i32_1 = arith.constant 0 : i32
    return %c0_i32, %c0_i32_0 : i32, i32
  }
  func.func @transform_6(%arg0: i32) -> (i32, i32) {
    %c0_i32 = arith.constant 0 : i32
    %c0_i32_0 = arith.constant 0 : i32
    %c0_i32_1 = arith.constant 0 : i32
    return %c0_i32, %c0_i32_0 : i32, i32
  }
  func.func @transform_7(%arg0: i32) -> (i32, i32) {
    %c0_i32 = arith.constant 0 : i32
    %c0_i32_0 = arith.constant 0 : i32
    %c0_i32_1 = arith.constant 0 : i32
    return %c0_i32, %c0_i32_0 : i32, i32
  }
  func.func @transform_8(%arg0: i32) -> (i32, i32) {
    %c0_i32 = arith.constant 0 : i32
    %c0_i32_0 = arith.constant 0 : i32
    return %arg0, %c0_i32 : i32, i32
  }
}

</mosaic_0001>

<llo_original>
// kernel: tpu_custom_call.1
$region0: #{tpu_custom_call.1}
  #allocation0 [shape = 'u32[]', space=smem, size = 0x4, offset = 0x4, fixed_abs, tag = 'smem constant byte address 0x4 - core index']
  #allocation1 [shape = 'u32[144,128]{1,0:T(1,128)}', space=vmem, size = 0x12000, scoped, tag = 'internal scratch']
  %s0 = inlined_call_operand.vmem [shape: f32[16,32], index: 0, kind: input, shape index: {}]
  %s1 = inlined_call_operand.vmem [shape: f32[1,32], index: 1, kind: input, shape index: {}]
  %s2 = inlined_call_operand.vmem [shape: bf16[32,96], index: 2, kind: input, shape index: {}]
  %s3 = inlined_call_operand.vmem [shape: f32[1,32], index: 3, kind: input, shape index: {}]
  %s4 = inlined_call_operand.vmem [shape: bf16[32,32], index: 4, kind: input, shape index: {}]
  %s5 = inlined_call_operand.vmem [shape: f32[1,32], index: 5, kind: input, shape index: {}]
  %s6 = inlined_call_operand.vmem [shape: bf16[32,512], index: 6, kind: input, shape index: {}]
  %s7 = inlined_call_operand.vmem [shape: bf16[256,32], index: 7, kind: input, shape index: {}]
  %s8 = inlined_call_operand.hbm [shape: f32[16,32], index: 8, kind: output, shape index: {}]
  %s9 = sld [smem:[#allocation0]]
  $region42: #{tpu_custom_call.1} parent=0
    _
  %s11 = ssub.s32 1, %s9
  %s12 = scalar_select 0, %s11, %s9
  $region1: #{tpu_custom_call.1} parent=0
    #allocation2 [shape = 'u8[8192]{0}', space=vmem, size = 0x2000, scoped, tag = 'output window, operand 0, single buffered']
    #allocation3 [shape = 's32[1]{0}', space=sflag, size = 0x4, scoped, tag = 'scoped memory for tpu_custom_call.1']
    %13 = vsyncpa [#allocation3], 0
    // Predicated region
    $region2: #{tpu_custom_call.1} parent=1 // pred_check
      _
    $region3: #{tpu_custom_call.1} parent=1 // pred_check_branch
      %15 = sbr.rel (0) target = $region5
    $region4: #{tpu_custom_call.1} parent=1 // pred_region
      _
    $region5: #{tpu_custom_call.1} parent=1 // pred_fallthru
      _
    // Predicated region
    $region6: #{tpu_custom_call.1} parent=1 // pred_check
      _
    $region7: #{tpu_custom_call.1} parent=1 // pred_check_branch
      %17 = sbr.rel (0) target = $region9
    $region8: #{tpu_custom_call.1} parent=1 // pred_region
      _
    $region9: #{tpu_custom_call.1} parent=1 // pred_fallthru
      _
    // Predicated region
    $region10: #{tpu_custom_call.1} parent=1 // pred_check
      _
    $region11: #{tpu_custom_call.1} parent=1 // pred_check_branch
      %19 = sbr.rel (0) target = $region13
    $region12: #{tpu_custom_call.1} parent=1 // pred_region
      _
    $region13: #{tpu_custom_call.1} parent=1 // pred_fallthru
      _
    // Predicated region
    $region14: #{tpu_custom_call.1} parent=1 // pred_check
      _
    $region15: #{tpu_custom_call.1} parent=1 // pred_check_branch
      %21 = sbr.rel (0) target = $region17
    $region16: #{tpu_custom_call.1} parent=1 // pred_region
      _
    $region17: #{tpu_custom_call.1} parent=1 // pred_fallthru
      _
    // Predicated region
    $region18: #{tpu_custom_call.1} parent=1 // pred_check
      _
    $region19: #{tpu_custom_call.1} parent=1 // pred_check_branch
      %23 = sbr.rel (0) target = $region21
    $region20: #{tpu_custom_call.1} parent=1 // pred_region
      _
    $region21: #{tpu_custom_call.1} parent=1 // pred_fallthru
      _
    // Predicated region
    $region22: #{tpu_custom_call.1} parent=1 // pred_check
      _
    $region23: #{tpu_custom_call.1} parent=1 // pred_check_branch
      %25 = sbr.rel (0) target = $region25
    $region24: #{tpu_custom_call.1} parent=1 // pred_region
      _
    $region25: #{tpu_custom_call.1} parent=1 // pred_fallthru
      _
    // Predicated region
    $region26: #{tpu_custom_call.1} parent=1 // pred_check
      _
    $region27: #{tpu_custom_call.1} parent=1 // pred_check_branch
      %27 = sbr.rel (0) target = $region29
    $region28: #{tpu_custom_call.1} parent=1 // pred_region
      _
    $region29: #{tpu_custom_call.1} parent=1 // pred_fallthru
      _
    // Predicated region
    $region30: #{tpu_custom_call.1} parent=1 // pred_check
      _
    $region31: #{tpu_custom_call.1} parent=1 // pred_check_branch
      %29 = sbr.rel (0) target = $region33
    $region32: #{tpu_custom_call.1} parent=1 // pred_region
      _
    $region33: #{tpu_custom_call.1} parent=1 // pred_fallthru
      _
    %v31 = vld [vmem:[%s0] sm:$0xff]
    %v32 = vld [vmem:[%s0 + $0x8] sm:$0xff]
    %v33 = vld [vmem:[%s1] sm:$0x1]
    %v34 = vmul.f32 %v31, %v31
    %v35 = vmul.f32 %v32, %v32
    %vm36 = vcmask 261120
    %v37 = vsel %vm36, %v34, 0.0
    %38 = vadd.xlane.f32.xlu0 %v37
    %v39 = vpop.xlane.xlu0 %38
    %v40 = vsel %vm36, %v35, 0.0
    %41 = vadd.xlane.f32.xlu0 %v40
    %v42 = vpop.xlane.xlu0 %41
    %v43 = vrcp.pop 32.0
    %v44 = vmul.f32 %v39, %v43
    %v45 = vmul.f32 %v42, %v43
    %v46 = vadd.f32 %v44, 1e-06
    %v47 = vadd.f32 %v45, 1e-06
    %v48 = vrsqrt.pop %v46
    %v49 = vrsqrt.pop %v47
    %v50 = vmul.f32 %v31, %v48
    %v51 = vmul.f32 %v32, %v49
    %v53 = vlaneseq
    %v54 = vshrl.u32 %v53, 7
    %v55 = vsub.s32 0, %v54
    %v56 = vrot.slane %v33, %v55
    %v58 = vmul.f32 %v50, %v56
    %v59 = vmul.f32 %v51, %v56
    %v60 = vpack.c.bf16 %v59, %v58
    %v61 = vld [vmem:[%s2] sm:$0xf]
    %v62 = vld [vmem:[%s2 + $0x4] sm:$0xf]
    %v63 = vld [vmem:[%s2 + $0x8] sm:$0xf]
    %v64 = vld [vmem:[%s2 + $0xc] sm:$0xf]
    %v69 = vunpack.c.l.b16 %v61
    %v70 = vunpack.c.l.b16 %v62
    %v71 = vunpack.c.l.b16 %v63
    %v72 = vunpack.c.l.b16 %v64
    %v73 = vpack.c.b16 %v70, %v69
    %v74 = vpack.c.b16 %v72, %v71
    %v78 = vsel %vm36, %v60, 0
    %80 = vmatprep.subr.bf16.mxu0 0
    %81 = vmatpush1.bf16.msra.mxu0 0
    %82 = vmatprep.subr.bf16.mxu0 0
    %83 = vmatpush1.bf16.msra.mxu0 0
    %84 = vmatprep.subr.bf16.mxu0 0
    %85 = vmatpush1.bf16.msra.mxu0 0
    %86 = vmatprep.subr.bf16.mxu0 0
    %87 = vmatpush1.bf16.msra.mxu0 0
    %88 = vmatprep.subr.bf16.mxu0 0
    %89 = vmatpush1.bf16.msra.mxu0 0
    %90 = vmatprep.subr.bf16.mxu0 0
    %91 = vmatpush1.bf16.msra.mxu0 0
    %92 = vmatprep.subr.bf16.mxu0 0
    %93 = vmatpush1.bf16.msra.mxu0 %v74
    %94 = vmatprep.subr.bf16.mxu0 0
    %95 = vmatpush1.bf16.msra.mxu0 %v73
    %96 = vmatprep.subr.bf16.mxu0 0
    %97 = vmatpush2.bf16.msra.mxu0 0
    %98 = vmatprep.subr.bf16.mxu0 0
    %99 = vmatpush2.bf16.msra.mxu0 0
    %100 = vmatprep.subr.bf16.mxu0 0
    %101 = vmatpush2.bf16.msra.mxu0 0
    %102 = vmatprep.subr.bf16.mxu0 0
    %103 = vmatpush2.bf16.msra.mxu0 0
    %104 = vmatprep.subr.bf16.mxu0 0
    %105 = vmatpush2.bf16.msra.mxu0 0
    %106 = vmatprep.subr.bf16.mxu0 0
    %107 = vmatpush2.bf16.msra.mxu0 0
    %108 = vmatprep.subr.bf16.mxu0 0
    %109 = vmatpush2.bf16.msra.mxu0 0
    %110 = vmatprep.subr.bf16.mxu0 0
    %111 = vmatpush2.bf16.msra.mxu0 0
    %112 = vmatprep.mubr.bf16.mxu0 0
    %113 = vmatmul.mubr.bf16.gmra.mxu0 %v78
    %v114 = vpop.f32.mrf.mxu0
    %v115 = vadd.f32 0.0, %v114
    %v116 = vpop.f32.mrf.mxu0
    %v117 = vpop.f32.mrf.mxu0
    %v118 = vadd.f32 0.0, %v117
    %v119 = vpop.f32.mrf.mxu0
    %120 = vdwg.mxu0
    %v121 = vxor.u32 %v115, 2147483648
    %v122 = vxor.u32 %v118, 2147483648
    %v123 = vmul.f32 %v121, 1.442695
    %v124 = vpow.pop %v123
    %v125 = vmul.f32 %v122, 1.442695
    %v126 = vpow.pop %v125
    %v127 = vadd.f32 %v124, 1.0
    %v128 = vadd.f32 %v126, 1.0
    %v129 = vrcp.pop %v127
    %v130 = vmul.f32 1.0, %v129
    %v131 = vrcp.pop %v128
    %v132 = vmul.f32 1.0, %v131
    %v133 = vmul.f32 %v115, %v130
    %v134 = vmul.f32 %v118, %v132
    %v135 = vsub.f32 1.0, %v130
    %v136 = vsub.f32 1.0, %v132
    %139 = vrot.lane.b32.xlu0 %v135, 96
    %v140 = vpop.permute.xlu0 %139
    %141 = vrot.lane.b32.xlu0 %v136, 96
    %v142 = vpop.permute.xlu0 %141
    %v145 = vmul.f32 %v133, %v140
    %v146 = vmul.f32 %v134, %v142
    %v147 = vlaneseq
    %v148 = vshrl.u32 %v147, 7
    %v149 = vadd.s32 %v148, 8
    %vm150 = vcmp.lt.s32.totalorder %v148, 0
    %v151 = vsub.s32 0, %v148
    %v152 = vsel %vm150, %v151, %v148
    %v153 = vshrl.u32 %v152, 3
    %v154 = vand.u32 %v152, 7
    %v155 = vsub.s32 0, %v154
    %v156 = vsel %vm150, %v155, %v154
    %vm157 = vcmp.lt.s32.totalorder %v149, 0
    %v158 = vsub.s32 0, %v149
    %v159 = vsel %vm157, %v158, %v149
    %v160 = vshrl.u32 %v159, 3
    %v161 = vand.u32 %v159, 7
    %v162 = vsub.s32 0, %v161
    %v163 = vsel %vm157, %v162, %v161
    %vm164 = vcmp.ne.s32.totalorder %v156, 0
    %vm165 = vcmp.ne.s32.totalorder %v163, 0
    %vm166 = vcmp.lt.s32.totalorder %v156, 0
    %vm167 = vcmp.lt.s32.totalorder %v163, 0
    %vm168 = vmand %vm166, %vm164
    %vm169 = vmand %vm167, %vm165
    %v170 = vadd.s32 %v156, 8
    %v171 = vadd.s32 %v163, 8
    %v172 = vsel %vm168, %v170, %v156
    %v173 = vsel %vm169, %v171, %v163
    %vm176 = vcmask 1040384
    %v177 = vrot.slane %v130, 7
    %v178 = vrot.slane %v132, 7
    %v179 = vsel %vm176, %v177, %v178
    %180 = vrot.lane.b32.xlu0 %v177, 96
    %v181 = vpop.permute.xlu0 %180
    %182 = vrot.lane.b32.xlu0 %v179, 96
    %v183 = vpop.permute.xlu0 %182
    %v186 = vsel %vm176, 1.0, %v181
    %v189 = vrot.slane %v145, 7
    %v190 = vrot.slane %v146, 7
    %v191 = vsel %vm176, %v189, %v190
    %v194 = vsel %vm176, 0.0, %v189
    %vm195 = vcmp.ge.s32.totalorder %v172, 1
    %vm196 = vcmp.ge.s32.totalorder %v173, 1
    %v197 = vsel %vm195, %v186, 1.0
    %v198 = vsel %vm196, %v183, 1.0
    %v199 = vsel %vm195, %v194, 0.0
    %v200 = vsel %vm196, %v191, 0.0
    %201 = vrot.lane.b32.xlu0 %v130, 96
    %v202 = vpop.permute.xlu0 %201
    %203 = vrot.lane.b32.xlu0 %v132, 96
    %v204 = vpop.permute.xlu0 %203
    %v207 = vmul.f32 %v197, %v202
    %v208 = vmul.f32 %v198, %v204
    %v209 = vmul.f32 %v199, %v202
    %v210 = vmul.f32 %v200, %v204
    %v211 = vadd.f32 %v209, %v145
    %v212 = vadd.f32 %v210, %v146
    %vm215 = vcmask 1041408
    %v216 = vrot.slane %v207, 6
    %v217 = vrot.slane %v208, 6
    %v218 = vsel %vm215, %v216, %v217
    %v221 = vsel %vm215, 1.0, %v216
    %v224 = vrot.slane %v211, 6
    %v225 = vrot.slane %v212, 6
    %v226 = vsel %vm215, %v224, %v225
    %v229 = vsel %vm215, 0.0, %v224
    %vm230 = vcmp.ge.s32.totalorder %v172, 2
    %vm231 = vcmp.ge.s32.totalorder %v173, 2
    %v232 = vsel %vm230, %v221, 1.0
    %v233 = vsel %vm231, %v218, 1.0
    %v234 = vsel %vm230, %v229, 0.0
    %v235 = vsel %vm231, %v226, 0.0
    %v236 = vmul.f32 %v232, %v207
    %v237 = vmul.f32 %v233, %v208
    %v238 = vmul.f32 %v234, %v207
    %v239 = vmul.f32 %v235, %v208
    %v240 = vadd.f32 %v238, %v211
    %v241 = vadd.f32 %v239, %v212
    %vm244 = vcmask 1043456
    %v245 = vrot.slane %v240, 4
    %v246 = vrot.slane %v241, 4
    %v247 = vsel %vm244, %v245, %v246
    %v250 = vsel %vm244, 0.0, %v245
    %vm251 = vcmp.ge.s32.totalorder %v172, 4
    %vm252 = vcmp.ge.s32.totalorder %v173, 4
    %v253 = vsel %vm251, %v250, 0.0
    %v254 = vsel %vm252, %v247, 0.0
    %v255 = vmul.f32 %v253, %v236
    %v256 = vmul.f32 %v254, %v237
    %v257 = vadd.f32 %v255, %v240
    %v258 = vadd.f32 %v256, %v241
    %v259 = vld [vmem:[%s3] sm:$0x1]
    %v260 = vmul.f32 %v257, %v257
    %v261 = vmul.f32 %v258, %v258
    %v262 = vsel %vm36, %v260, 0.0
    %263 = vadd.xlane.f32.xlu0 %v262
    %v264 = vpop.xlane.xlu0 %263
    %v265 = vsel %vm36, %v261, 0.0
    %266 = vadd.xlane.f32.xlu0 %v265
    %v267 = vpop.xlane.xlu0 %266
    %v268 = vmul.f32 %v264, %v43
    %v269 = vmul.f32 %v267, %v43
    %v270 = vadd.f32 %v268, 1e-06
    %v271 = vadd.f32 %v269, 1e-06
    %v272 = vrsqrt.pop %v270
    %v273 = vrsqrt.pop %v271
    %v274 = vmul.f32 %v257, %v272
    %v275 = vmul.f32 %v258, %v273
    %v277 = vlaneseq
    %v278 = vshrl.u32 %v277, 7
    %v279 = vsub.s32 0, %v278
    %v280 = vrot.slane %v259, %v279
    %v282 = vmul.f32 %v274, %v280
    %v283 = vmul.f32 %v275, %v280
    %286 = vrot.lane.b32.xlu0 %v133, 64
    %v287 = vpop.permute.xlu0 %286
    %288 = vrot.lane.b32.xlu0 %v134, 64
    %v289 = vpop.permute.xlu0 %288
    %v292 = vmul.f32 %v282, %v287
    %v293 = vmul.f32 %v283, %v289
    %v294 = vpack.c.bf16 %v293, %v292
    %v295 = vld [vmem:[%s4] sm:$0xf]
    %v296 = vld [vmem:[%s4 + $0x4] sm:$0xf]
    %v297 = vld [vmem:[%s4 + $0x8] sm:$0xf]
    %v298 = vld [vmem:[%s4 + $0xc] sm:$0xf]
    %v303 = vunpack.c.l.b16 %v295
    %v304 = vunpack.c.l.b16 %v296
    %v305 = vunpack.c.l.b16 %v297
    %v306 = vunpack.c.l.b16 %v298
    %v307 = vpack.c.b16 %v304, %v303
    %v308 = vpack.c.b16 %v306, %v305
    %v312 = vsel %vm36, %v294, 0
    %314 = vmatprep.subr.bf16.mxu0 0
    %315 = vmatpush1.bf16.msra.mxu0 0
    %316 = vmatprep.subr.bf16.mxu0 0
    %317 = vmatpush1.bf16.msra.mxu0 0
    %318 = vmatprep.subr.bf16.mxu0 0
    %319 = vmatpush1.bf16.msra.mxu0 0
    %320 = vmatprep.subr.bf16.mxu0 0
    %321 = vmatpush1.bf16.msra.mxu0 0
    %322 = vmatprep.subr.bf16.mxu0 0
    %323 = vmatpush1.bf16.msra.mxu0 0
    %324 = vmatprep.subr.bf16.mxu0 0
    %325 = vmatpush1.bf16.msra.mxu0 0
    %326 = vmatprep.subr.bf16.mxu0 0
    %327 = vmatpush1.bf16.msra.mxu0 %v308
    %328 = vmatprep.subr.bf16.mxu0 0
    %329 = vmatpush1.bf16.msra.mxu0 %v307
    %330 = vmatprep.subr.bf16.mxu0 0
    %331 = vmatpush2.bf16.msra.mxu0 0
    %332 = vmatprep.subr.bf16.mxu0 0
    %333 = vmatpush2.bf16.msra.mxu0 0
    %334 = vmatprep.subr.bf16.mxu0 0
    %335 = vmatpush2.bf16.msra.mxu0 0
    %336 = vmatprep.subr.bf16.mxu0 0
    %337 = vmatpush2.bf16.msra.mxu0 0
    %338 = vmatprep.subr.bf16.mxu0 0
    %339 = vmatpush2.bf16.msra.mxu0 0
    %340 = vmatprep.subr.bf16.mxu0 0
    %341 = vmatpush2.bf16.msra.mxu0 0
    %342 = vmatprep.subr.bf16.mxu0 0
    %343 = vmatpush2.bf16.msra.mxu0 0
    %344 = vmatprep.subr.bf16.mxu0 0
    %345 = vmatpush2.bf16.msra.mxu0 0
    %346 = vmatprep.mubr.bf16.mxu0 0
    %347 = vmatmul.mubr.bf16.gmra.mxu0 %v312
    %v348 = vpop.f32.mrf.mxu0
    %v349 = vadd.f32 0.0, %v348
    %v350 = vpop.f32.mrf.mxu0
    %v351 = vpop.f32.mrf.mxu0
    %v352 = vadd.f32 0.0, %v351
    %v353 = vpop.f32.mrf.mxu0
    %354 = vdwg.mxu0
    %v355 = vadd.f32 %v31, %v349
    %v356 = vadd.f32 %v32, %v352
    %v357 = vld [vmem:[%s5] sm:$0x1]
    %v358 = vmul.f32 %v355, %v355
    %v359 = vmul.f32 %v356, %v356
    %v360 = vsel %vm36, %v358, 0.0
    %361 = vadd.xlane.f32.xlu0 %v360
    %v362 = vpop.xlane.xlu0 %361
    %v363 = vsel %vm36, %v359, 0.0
    %364 = vadd.xlane.f32.xlu0 %v363
    %v365 = vpop.xlane.xlu0 %364
    %v366 = vmul.f32 %v362, %v43
    %v367 = vmul.f32 %v365, %v43
    %v368 = vadd.f32 %v366, 1e-06
    %v369 = vadd.f32 %v367, 1e-06
    %v370 = vrsqrt.pop %v368
    %v371 = vrsqrt.pop %v369
    %v372 = vmul.f32 %v355, %v370
    %v373 = vmul.f32 %v356, %v371
    %v375 = vlaneseq
    %v376 = vshrl.u32 %v375, 7
    %v377 = vsub.s32 0, %v376
    %v378 = vrot.slane %v357, %v377
    %v380 = vmul.f32 %v372, %v378
    %v381 = vmul.f32 %v373, %v378
    %v382 = vpack.c.bf16 %v381, %v380
    %v383 = vld [vmem:[%s6] sm:$0xff]
    %v384 = vld [vmem:[%s6 + $0x8] sm:$0xff]
    %v385 = vld [vmem:[%s6 + $0x10] sm:$0xff]
    %v386 = vld [vmem:[%s6 + $0x18] sm:$0xff]
    %v387 = vld [vmem:[%s6 + $0x20] sm:$0xff]
    %v388 = vld [vmem:[%s6 + $0x28] sm:$0xff]
    %v389 = vld [vmem:[%s6 + $0x30] sm:$0xff]
    %v390 = vld [vmem:[%s6 + $0x38] sm:$0xff]
    %v399 = vunpack.c.l.b16 %v383
    %v400 = vunpack.c.h.b16 %v383
    %v401 = vunpack.c.l.b16 %v384
    %v402 = vunpack.c.h.b16 %v384
    %v403 = vunpack.c.l.b16 %v385
    %v404 = vunpack.c.h.b16 %v385
    %v405 = vunpack.c.l.b16 %v386
    %v406 = vunpack.c.h.b16 %v386
    %v407 = vunpack.c.l.b16 %v387
    %v408 = vunpack.c.h.b16 %v387
    %v409 = vunpack.c.l.b16 %v388
    %v410 = vunpack.c.h.b16 %v388
    %v411 = vunpack.c.l.b16 %v389
    %v412 = vunpack.c.h.b16 %v389
    %v413 = vunpack.c.l.b16 %v390
    %v414 = vunpack.c.h.b16 %v390
    %v415 = vpack.c.b16 %v403, %v399
    %v416 = vpack.c.b16 %v404, %v400
    %v417 = vpack.c.b16 %v405, %v401
    %v418 = vpack.c.b16 %v406, %v402
    %v419 = vpack.c.b16 %v411, %v407
    %v420 = vpack.c.b16 %v412, %v408
    %v421 = vpack.c.b16 %v413, %v409
    %v422 = vpack.c.b16 %v414, %v410
    %v432 = vsel %vm36, %v382, 0
    %434 = vmatprep.subr.bf16.mxu0 0
    %435 = vmatpush1.bf16.msra.mxu0 0
    %436 = vmatprep.subr.bf16.mxu0 0
    %437 = vmatpush1.bf16.msra.mxu0 0
    %438 = vmatprep.subr.bf16.mxu0 0
    %439 = vmatpush1.bf16.msra.mxu0 0
    %440 = vmatprep.subr.bf16.mxu0 0
    %441 = vmatpush1.bf16.msra.mxu0 0
    %442 = vmatprep.subr.bf16.mxu0 0
    %443 = vmatpush1.bf16.msra.mxu0 0
    %444 = vmatprep.subr.bf16.mxu0 0
    %445 = vmatpush1.bf16.msra.mxu0 0
    %446 = vmatprep.subr.bf16.mxu0 %v420
    %447 = vmatpush1.bf16.msra.mxu0 %v419
    %448 = vmatprep.subr.bf16.mxu0 %v416
    %449 = vmatpush1.bf16.msra.mxu0 %v415
    %450 = vmatprep.subr.bf16.mxu0 0
    %451 = vmatpush2.bf16.msra.mxu0 0
    %452 = vmatprep.subr.bf16.mxu0 0
    %453 = vmatpush2.bf16.msra.mxu0 0
    %454 = vmatprep.subr.bf16.mxu0 0
    %455 = vmatpush2.bf16.msra.mxu0 0
    %456 = vmatprep.subr.bf16.mxu0 0
    %457 = vmatpush2.bf16.msra.mxu0 0
    %458 = vmatprep.subr.bf16.mxu0 0
    %459 = vmatpush2.bf16.msra.mxu0 0
    %460 = vmatprep.subr.bf16.mxu0 0
    %461 = vmatpush2.bf16.msra.mxu0 0
    %462 = vmatprep.subr.bf16.mxu0 0
    %463 = vmatpush2.bf16.msra.mxu0 0
    %464 = vmatprep.subr.bf16.mxu0 0
    %465 = vmatpush2.bf16.msra.mxu0 0
    %466 = vmatprep.mubr.bf16.mxu0 0
    %467 = vmatmul.mubr.bf16.gmra.mxu0 %v432
    %v468 = vpop.f32.mrf.mxu0
    %v469 = vadd.f32 0.0, %v468
    %v470 = vpop.f32.mrf.mxu0
    %v471 = vadd.f32 0.0, %v470
    %v472 = vpop.f32.mrf.mxu0
    %v473 = vadd.f32 0.0, %v472
    %v474 = vpop.f32.mrf.mxu0
    %v475 = vadd.f32 0.0, %v474
    %476 = vdwg.mxu0
    %477 = vmatprep.subr.bf16.mxu0 0
    %478 = vmatpush1.bf16.msra.mxu0 0
    %479 = vmatprep.subr.bf16.mxu0 0
    %480 = vmatpush1.bf16.msra.mxu0 0
    %481 = vmatprep.subr.bf16.mxu0 0
    %482 = vmatpush1.bf16.msra.mxu0 0
    %483 = vmatprep.subr.bf16.mxu0 0
    %484 = vmatpush1.bf16.msra.mxu0 0
    %485 = vmatprep.subr.bf16.mxu0 0
    %486 = vmatpush1.bf16.msra.mxu0 0
    %487 = vmatprep.subr.bf16.mxu0 0
    %488 = vmatpush1.bf16.msra.mxu0 0
    %489 = vmatprep.subr.bf16.mxu0 %v422
    %490 = vmatpush1.bf16.msra.mxu0 %v421
    %491 = vmatprep.subr.bf16.mxu0 %v418
    %492 = vmatpush1.bf16.msra.mxu0 %v417
    %493 = vmatprep.subr.bf16.mxu0 0
    %494 = vmatpush2.bf16.msra.mxu0 0
    %495 = vmatprep.subr.bf16.mxu0 0
    %496 = vmatpush2.bf16.msra.mxu0 0
    %497 = vmatprep.subr.bf16.mxu0 0
    %498 = vmatpush2.bf16.msra.mxu0 0
    %499 = vmatprep.subr.bf16.mxu0 0
    %500 = vmatpush2.bf16.msra.mxu0 0
    %501 = vmatprep.subr.bf16.mxu0 0
    %502 = vmatpush2.bf16.msra.mxu0 0
    %503 = vmatprep.subr.bf16.mxu0 0
    %504 = vmatpush2.bf16.msra.mxu0 0
    %505 = vmatprep.subr.bf16.mxu0 0
    %506 = vmatpush2.bf16.msra.mxu0 0
    %507 = vmatprep.subr.bf16.mxu0 0
    %508 = vmatpush2.bf16.msra.mxu0 0
    %509 = vmatprep.mubr.bf16.mxu0 0
    %510 = vmatmul.mubr.bf16.gmra.mxu0 %v432
    %v511 = vpop.f32.mrf.mxu0
    %v512 = vadd.f32 0.0, %v511
    %v513 = vpop.f32.mrf.mxu0
    %v514 = vadd.f32 0.0, %v513
    %v515 = vpop.f32.mrf.mxu0
    %v516 = vadd.f32 0.0, %v515
    %v517 = vpop.f32.mrf.mxu0
    %v518 = vadd.f32 0.0, %v517
    %519 = vdwg.mxu0
    %v520 = vxor.u32 %v469, 2147483648
    %v521 = vxor.u32 %v471, 2147483648
    %v522 = vxor.u32 %v473, 2147483648
    %v523 = vxor.u32 %v475, 2147483648
    %v524 = vmul.f32 %v520, 1.442695
    %v525 = vpow.pop %v524
    %v526 = vmul.f32 %v521, 1.442695
    %v527 = vpow.pop %v526
    %v528 = vmul.f32 %v522, 1.442695
    %v529 = vpow.pop %v528
    %v530 = vmul.f32 %v523, 1.442695
    %v531 = vpow.pop %v530
    %v532 = vadd.f32 %v525, 1.0
    %v533 = vadd.f32 %v527, 1.0
    %v534 = vadd.f32 %v529, 1.0
    %v535 = vadd.f32 %v531, 1.0
    %v536 = vrcp.pop %v532
    %v537 = vmul.f32 1.0, %v536
    %v538 = vrcp.pop %v533
    %v539 = vmul.f32 1.0, %v538
    %v540 = vrcp.pop %v534
    %v541 = vmul.f32 1.0, %v540
    %v542 = vrcp.pop %v535
    %v543 = vmul.f32 1.0, %v542
    %v544 = vmul.f32 %v469, %v537
    %v545 = vmul.f32 %v471, %v539
    %v546 = vmul.f32 %v473, %v541
    %v547 = vmul.f32 %v475, %v543
    %v548 = vmul.f32 %v544, %v512
    %v549 = vmul.f32 %v545, %v514
    %v550 = vmul.f32 %v546, %v516
    %v551 = vmul.f32 %v547, %v518
    %v552 = vpack.c.bf16 %v550, %v548
    %v553 = vpack.c.bf16 %v551, %v549
    %v554 = vld [vmem:[%s7] sm:$0xf]
    %v555 = vld [vmem:[%s7 + $0x4] sm:$0xf]
    %v556 = vld [vmem:[%s7 + $0x8] sm:$0xf]
    %v557 = vld [vmem:[%s7 + $0xc] sm:$0xf]
    %v558 = vld [vmem:[%s7 + $0x10] sm:$0xf]
    %v559 = vld [vmem:[%s7 + $0x14] sm:$0xf]
    %v560 = vld [vmem:[%s7 + $0x18] sm:$0xf]
    %v561 = vld [vmem:[%s7 + $0x1c] sm:$0xf]
    %v562 = vld [vmem:[%s7 + $0x20] sm:$0xf]
    %v563 = vld [vmem:[%s7 + $0x24] sm:$0xf]
    %v564 = vld [vmem:[%s7 + $0x28] sm:$0xf]
    %v565 = vld [vmem:[%s7 + $0x2c] sm:$0xf]
    %v566 = vld [vmem:[%s7 + $0x30] sm:$0xf]
    %v567 = vld [vmem:[%s7 + $0x34] sm:$0xf]
    %v568 = vld [vmem:[%s7 + $0x38] sm:$0xf]
    %v569 = vld [vmem:[%s7 + $0x3c] sm:$0xf]
    %v570 = vld [vmem:[%s7 + $0x40] sm:$0xf]
    %v571 = vld [vmem:[%s7 + $0x44] sm:$0xf]
    %v572 = vld [vmem:[%s7 + $0x48] sm:$0xf]
    %v573 = vld [vmem:[%s7 + $0x4c] sm:$0xf]
    %v574 = vld [vmem:[%s7 + $0x50] sm:$0xf]
    %v575 = vld [vmem:[%s7 + $0x54] sm:$0xf]
    %v576 = vld [vmem:[%s7 + $0x58] sm:$0xf]
    %v577 = vld [vmem:[%s7 + $0x5c] sm:$0xf]
    %v578 = vld [vmem:[%s7 + $0x60] sm:$0xf]
    %v579 = vld [vmem:[%s7 + $0x64] sm:$0xf]
    %v580 = vld [vmem:[%s7 + $0x68] sm:$0xf]
    %v581 = vld [vmem:[%s7 + $0x6c] sm:$0xf]
    %v582 = vld [vmem:[%s7 + $0x70] sm:$0xf]
    %v583 = vld [vmem:[%s7 + $0x74] sm:$0xf]
    %v584 = vld [vmem:[%s7 + $0x78] sm:$0xf]
    %v585 = vld [vmem:[%s7 + $0x7c] sm:$0xf]
    %v618 = vunpack.c.l.b16 %v554
    %v619 = vunpack.c.l.b16 %v555
    %v620 = vunpack.c.l.b16 %v556
    %v621 = vunpack.c.l.b16 %v557
    %v622 = vunpack.c.l.b16 %v558
    %v623 = vunpack.c.l.b16 %v559
    %v624 = vunpack.c.l.b16 %v560
    %v625 = vunpack.c.l.b16 %v561
    %v626 = vunpack.c.l.b16 %v562
    %v627 = vunpack.c.l.b16 %v563
    %v628 = vunpack.c.l.b16 %v564
    %v629 = vunpack.c.l.b16 %v565
    %v630 = vunpack.c.l.b16 %v566
    %v631 = vunpack.c.l.b16 %v567
    %v632 = vunpack.c.l.b16 %v568
    %v633 = vunpack.c.l.b16 %v569
    %v634 = vunpack.c.l.b16 %v570
    %v635 = vunpack.c.l.b16 %v571
    %v636 = vunpack.c.l.b16 %v572
    %v637 = vunpack.c.l.b16 %v573
    %v638 = vunpack.c.l.b16 %v574
    %v639 = vunpack.c.l.b16 %v575
    %v640 = vunpack.c.l.b16 %v576
    %v641 = vunpack.c.l.b16 %v577
    %v642 = vunpack.c.l.b16 %v578
    %v643 = vunpack.c.l.b16 %v579
    %v644 = vunpack.c.l.b16 %v580
    %v645 = vunpack.c.l.b16 %v581
    %v646 = vunpack.c.l.b16 %v582
    %v647 = vunpack.c.l.b16 %v583
    %v648 = vunpack.c.l.b16 %v584
    %v649 = vunpack.c.l.b16 %v585
    %v650 = vpack.c.b16 %v619, %v618
    %v651 = vpack.c.b16 %v621, %v620
    %v652 = vpack.c.b16 %v623, %v622
    %v653 = vpack.c.b16 %v625, %v624
    %v654 = vpack.c.b16 %v627, %v626
    %v655 = vpack.c.b16 %v629, %v628
    %v656 = vpack.c.b16 %v631, %v630
    %v657 = vpack.c.b16 %v633, %v632
    %v658 = vpack.c.b16 %v635, %v634
    %v659 = vpack.c.b16 %v637, %v636
    %v660 = vpack.c.b16 %v639, %v638
    %v661 = vpack.c.b16 %v641, %v640
    %v662 = vpack.c.b16 %v643, %v642
    %v663 = vpack.c.b16 %v645, %v644
    %v664 = vpack.c.b16 %v647, %v646
    %v665 = vpack.c.b16 %v649, %v648
    %682 = vmatprep.subr.bf16.mxu0 0
    %683 = vmatpush1.bf16.msra.mxu0 %v657
    %684 = vmatprep.subr.bf16.mxu0 0
    %685 = vmatpush1.bf16.msra.mxu0 %v656
    %686 = vmatprep.subr.bf16.mxu0 0
    %687 = vmatpush1.bf16.msra.mxu0 %v655
    %688 = vmatprep.subr.bf16.mxu0 0
    %689 = vmatpush1.bf16.msra.mxu0 %v654
    %690 = vmatprep.subr.bf16.mxu0 0
    %691 = vmatpush1.bf16.msra.mxu0 %v653
    %692 = vmatprep.subr.bf16.mxu0 0
    %693 = vmatpush1.bf16.msra.mxu0 %v652
    %694 = vmatprep.subr.bf16.mxu0 0
    %695 = vmatpush1.bf16.msra.mxu0 %v651
    %696 = vmatprep.subr.bf16.mxu0 0
    %697 = vmatpush1.bf16.msra.mxu0 %v650
    %698 = vmatprep.subr.bf16.mxu0 0
    %699 = vmatpush2.bf16.msra.mxu0 %v665
    %700 = vmatprep.subr.bf16.mxu0 0
    %701 = vmatpush2.bf16.msra.mxu0 %v664
    %702 = vmatprep.subr.bf16.mxu0 0
    %703 = vmatpush2.bf16.msra.mxu0 %v663
    %704 = vmatprep.subr.bf16.mxu0 0
    %705 = vmatpush2.bf16.msra.mxu0 %v662
    %706 = vmatprep.subr.bf16.mxu0 0
    %707 = vmatpush2.bf16.msra.mxu0 %v661
    %708 = vmatprep.subr.bf16.mxu0 0
    %709 = vmatpush2.bf16.msra.mxu0 %v660
    %710 = vmatprep.subr.bf16.mxu0 0
    %711 = vmatpush2.bf16.msra.mxu0 %v659
    %712 = vmatprep.subr.bf16.mxu0 0
    %713 = vmatpush2.bf16.msra.mxu0 %v658
    %714 = vmatprep.mubr.bf16.mxu0 %v553
    %715 = vmatmul.mubr.bf16.gmra.mxu0 %v552
    %v716 = vpop.f32.mrf.mxu0
    %v717 = vadd.f32 0.0, %v716
    %v718 = vpop.f32.mrf.mxu0
    %v719 = vpop.f32.mrf.mxu0
    %v720 = vadd.f32 0.0, %v719
    %v721 = vpop.f32.mrf.mxu0
    %722 = vdwg.mxu0
    %v723 = vadd.f32 %v355, %v717
    %v724 = vadd.f32 %v356, %v720
    %725 = vst.msk [vmem:[#allocation2] sm:$0xff] %vm36, %v723
    %726 = vst.msk [vmem:[#allocation2 + $0x8] sm:$0xff] %vm36, %v724
    // Predicated region
    $region34: #{tpu_custom_call.1} parent=1 // pred_check
      _
    $region35: #{tpu_custom_call.1} parent=1 // pred_check_branch
      %728 = sbr.rel (0) target = $region37
    $region36: #{tpu_custom_call.1} parent=1 // pred_region
      %s730 = ssub.s32 256, 256
      %731 = vsyncadd [#allocation3], %s730
      %s732 = sshll.u32 [#allocation2], 4
      %s733 = int_to_ptr.vmem [resolvable:$true] %s732
      %738 = dma.vmem_to_hbm [thread:$0]  %s733, 256, %s8, [#allocation3], 128, 128, 8
    $region37: #{tpu_custom_call.1} parent=1 // pred_fallthru
      _
    // Predicated region
    $region38: #{tpu_custom_call.1} parent=1 // pred_check
      _
    $region39: #{tpu_custom_call.1} parent=1 // pred_check_branch
      %740 = sbr.rel (0) target = $region41
    $region40: #{tpu_custom_call.1} parent=1 // pred_region
      %741 = dma.done [#allocation3], 256
    $region41: #{tpu_custom_call.1} parent=1 // pred_fallthru
      _
    %742 = vsyncpa [#allocation3], 1

</llo_original>
